<compile_context>
chip_gen: v6e
topology: v6e:2x2x1
jax: 0.10.0
libtpu: 0.0.40
codegen_flags: <defaults>
</compile_context>

<pallas_src>
import functools

import jax
import jax.numpy as jnp
from jax import lax
from jax.experimental import pallas as pl
from jax.experimental.pallas import tpu as pltpu


_MAX_STATIC_SEQ_TILE = 16   # fully unroll the pooling loop up to this chunk size


def classifier_kernel(x_ref, w1_ref, b1_ref, w2_ref, b2_ref, out_ref, *scratch,
                      n_grams, seq_len, seq_tile, num_seq_chunks, static_path):
    """x_ref: (tn, ts, D) block of the native-layout hidden states."""
    tn = x_ref.shape[0]
    windowed = seq_len >= n_grams          # module falls back to plain max if S < n
    inv_n = jnp.float32(1.0 / n_grams)

    def mlp_head(pooled):
        # ---- dropout: identity in eval mode --------------------------------
        # ---- manifold mixup: identity in eval mode -------------------------
        # TODO(synk): training-mode dropout / manifold mixup not implemented.
        h = jnp.dot(pooled.astype(w1_ref.dtype), w1_ref[...],
                    preferred_element_type=jnp.float32)
        h = jnp.maximum(h + b1_ref[...], 0.0)                       # (tn, Hp)
        logits = jnp.dot(h.astype(w2_ref.dtype), w2_ref[...],
                         preferred_element_type=jnp.float32)
        out_ref[0:tn, :] = jax.nn.sigmoid(logits + b2_ref[...]).astype(out_ref.dtype)

    if static_path:
        # Single small sequence chunk: fully static rolling-sum pooling
        # (no dynamic VMEM indexing; the short history lives in vregs).
        hist = []
        roll_sum = None
        run_max = None
        for j in range(seq_tile):
            plane = x_ref[:, j, :].astype(jnp.float32)              # (tn, D)
            if windowed:
                roll_sum = plane if roll_sum is None else roll_sum + plane
                hist.append(plane)
                if len(hist) > n_grams:
                    roll_sum = roll_sum - hist.pop(0)               # rolling sum
                if len(hist) == n_grams:                            # valid window
                    run_max = (roll_sum if run_max is None
                               else jnp.maximum(run_max, roll_sum))
            else:
                run_max = plane if run_max is None else jnp.maximum(run_max, plane)
        mlp_head(run_max * inv_n if windowed else run_max)
        return

    # ---- general path: sequence streamed across grid axis 1 ("arbitrary") ----
    hist_ref, sum_ref, max_ref = scratch
    k = pl.program_id(1)
    single = num_seq_chunks == 1

    def init():
        hist_ref[...] = jnp.zeros_like(hist_ref)
        sum_ref[...] = jnp.zeros_like(sum_ref)
        max_ref[...] = jnp.full_like(max_ref, -jnp.inf)

    if single:
        init()
    else:
        pl.when(k == 0)(init)

    base = 0 if single else k * seq_tile

    if windowed:
        def body(j, carry):
            roll_sum, run_max = carry
            i = base + j                                            # global position
            plane = x_ref[:, j, :].astype(jnp.float32)              # (tn, D)
            slot = lax.rem(i, n_grams)
            old = hist_ref[slot]        # plane(i - n_grams), zero while i < n_grams
            hist_ref[slot] = plane
            roll_sum = roll_sum + (plane - old)                     # rolling sum
            run_max = jnp.where(i >= n_grams - 1,
                                jnp.maximum(run_max, roll_sum), run_max)
            return roll_sum, run_max
    else:
        # hier_pool fallback for S < n_grams: plain max over raw hidden states.
        def body(j, carry):
            roll_sum, run_max = carry
            plane = x_ref[:, j, :].astype(jnp.float32)
            return roll_sum, jnp.maximum(run_max, plane)

    roll_sum, run_max = lax.fori_loop(
        0, seq_tile, body, (sum_ref[...], max_ref[...]),
        unroll=min(8, seq_tile))
    sum_ref[...] = roll_sum
    max_ref[...] = run_max

    def finalize():
        pooled = max_ref[...]
        mlp_head(pooled * inv_n if windowed else pooled)

    if single:
        finalize()
    else:
        pl.when(k == num_seq_chunks - 1)(finalize)


def _round_up(v, m):
    return (v + m - 1) // m * m


def _vmem_budget_bytes():
    """Generation-aware budget for the double-buffered x working set."""
    phys = 64 << 20                         # conservative default (v7x per-core VMEM)
    try:
        phys = int(getattr(pltpu.get_tpu_info(), "vmem_capacity_bytes", phys))
    except Exception:
        pass
    # ~28 MiB on v7x (64 MiB VMEM/core), ~44 MiB on v5e/v6e (128 MiB VMEM);
    # an explicit vmem_limit_bytes is passed so v5e's 16 MiB scoped default
    # never constrains the chosen tiling.
    return max(8 << 20, min(phys // 2 - (4 << 20), 44 << 20))


def _choose_tiles(N, S, D, itemsize):
    budget = _vmem_budget_bytes()
    pos_bytes = D * itemsize

    # Sequence tile: whole sequence when a double-buffered row fits the budget,
    # otherwise the largest multiple-of-8 divisor of S that fits.
    if 2 * S * pos_bytes <= budget:
        ts = S
    else:
        ts = 0
        t = min(S, (budget // (2 * pos_bytes)) // 8 * 8)
        while t >= 8:
            if S % t == 0:
                ts = t
                break
            t -= 8
        if ts == 0:
            # TODO(synk): S has no multiple-of-8 divisor that fits the VMEM
            # budget; fall back to whole-sequence blocks (vmem_limit is raised
            # below, but pathologically long sequences may still not fit).
            ts = S

    # Batch tile: as large as the budget allows, but keep >= 2 (ideally >= 4)
    # steps on the parallel axis (pipelining + v7x megacore) and cap the
    # per-step vreg/VALU footprint.
    tn = max(1, min(N, budget // (2 * ts * pos_bytes), 32))
    if N >= 4:
        tn = min(tn, N // 4)
    elif N >= 2:
        tn = min(tn, N // 2)
    while tn > 1 and N % tn != 0:
        tn -= 1
    return tn, ts


def classifier_forward(x, w1, b1, w2, b2, *, n_grams=3):
    """x: (N, S, 768) BERT last hidden states (native layout, any float dtype);
    returns sigmoid logits (N, classes)."""
    N, S, D = x.shape
    H = w1.shape[1]
    C = w2.shape[1]
    itemsize = jnp.dtype(x.dtype).itemsize

    tn, ts = _choose_tiles(N, S, D, itemsize)
    assert N % tn == 0 and S % ts == 0
    nb, nk = N // tn, S // ts
    static_path = (nk == 1 and ts <= _MAX_STATIC_SEQ_TILE)

    # Lane-dense weights / biases / output: pad hidden & class dims to 128.
    # bf16 weights feed the MXU at native rate; accumulation stays f32.
    Hp = _round_up(H, 128)
    Cp = _round_up(C, 128)
    w1p = jnp.zeros((D, Hp), jnp.bfloat16).at[:, :H].set(w1.astype(jnp.bfloat16))
    b1p = jnp.zeros((1, Hp), jnp.float32).at[0, :H].set(b1.astype(jnp.float32))
    w2p = jnp.zeros((Hp, Cp), jnp.bfloat16).at[:H, :C].set(w2.astype(jnp.bfloat16))
    b2p = jnp.zeros((1, Cp), jnp.float32).at[0, :C].set(b2.astype(jnp.float32))

    R = _round_up(tn, 8)                     # sublane-aligned output row block

    kernel = functools.partial(
        classifier_kernel, n_grams=n_grams, seq_len=S, seq_tile=ts,
        num_seq_chunks=nk, static_path=static_path)

    scratch = [] if static_path else [
        pltpu.VMEM((n_grams, tn, D), jnp.float32),   # last n_grams planes
        pltpu.VMEM((tn, D), jnp.float32),            # rolling window sum
        pltpu.VMEM((tn, D), jnp.float32),            # running max of window sums
    ]

    # Explicit VMEM limit: double-buffered x blocks + resident weights + output
    # + scratch + headroom (keeps v5e off its 16 MiB scoped default, stays well
    # under v7x's 64 MiB physical VMEM).
    x_block_bytes = tn * ts * D * itemsize
    w_bytes = (D * Hp + Hp * Cp) * 2 + (Hp + Cp) * 4
    scr_bytes = 0 if static_path else (n_grams + 2) * max(tn, 8) * D * 4
    vmem_limit = 2 * x_block_bytes + 2 * w_bytes + 2 * R * Cp * 4 + scr_bytes + (6 << 20)
    vmem_limit = int(min(max(vmem_limit, 16 << 20), 56 << 20))

    cost = pl.CostEstimate(
        flops=int(4 * N * S * D + 2 * N * D * Hp + 2 * N * Hp * Cp),
        transcendentals=int(N * Cp),
        bytes_accessed=int(N * S * D * itemsize + w_bytes + nb * R * Cp * 4),
    )

    out = pl.pallas_call(
        kernel,
        out_shape=jax.ShapeDtypeStruct((nb, R, Cp), jnp.float32),
        grid=(nb, nk),
        in_specs=[
            # x streamed in its native (N, S, D) layout: batch-tiled on the
            # parallel axis, sequence-chunked on the arbitrary axis. Default
            # double-buffering; sweep pl.Buffered(3) on v7x if DMA-exposed.
            pl.BlockSpec((tn, ts, D), lambda i, k: (i, k, 0)),
            # weights / biases: constant index_map -> stay VMEM-resident.
            pl.BlockSpec((D, Hp), lambda i, k: (0, 0)),
            pl.BlockSpec((1, Hp), lambda i, k: (0, 0)),
            pl.BlockSpec((Hp, Cp), lambda i, k: (0, 0)),
            pl.BlockSpec((1, Cp), lambda i, k: (0, 0)),
        ],
        # Lane-dense output block, resident across the sequence axis and
        # written once per batch tile.
        out_specs=pl.BlockSpec((None, R, Cp), lambda i, k: (i, 0, 0)),
        scratch_shapes=scratch,
        compiler_params=pltpu.CompilerParams(
            dimension_semantics=("parallel", "arbitrary"),
            vmem_limit_bytes=vmem_limit,
        ),
        cost_estimate=cost,
    )(x, w1p, b1p, w2p, b2p)

    return out[:, :tn, :].reshape(N, Cp)[:, :C]


if __name__ == "__main__":
    # Small, module-consistent shapes.
    N = 2            # batch
    S = 8            # sequence length
    D = 768          # BERT hidden size (hard-coded in the module)
    HIDDEN = 32      # config['hidden_size']
    CLASSES = 4      # classes_num
    N_GRAMS = 3      # config['n_grams']

    key = jax.random.PRNGKey(0)
    k_x, k_w1, k_b1, k_w2, k_b2, k_xs = jax.random.split(key, 6)

    # Synthetic BERT output hidden states (stand-in for the pretrained encoder).
    x = jax.random.normal(k_x, (N, S, D), dtype=jnp.float32)

    # Deterministic parameter init (nn.Linear-like uniform fan-in scaling).
    bound1 = 1.0 / (D ** 0.5)
    w1 = jax.random.uniform(k_w1, (D, HIDDEN), jnp.float32, -bound1, bound1)
    b1 = jax.random.uniform(k_b1, (HIDDEN,), jnp.float32, -bound1, bound1)
    bound2 = 1.0 / (HIDDEN ** 0.5)
    w2 = jax.random.uniform(k_w2, (HIDDEN, CLASSES), jnp.float32, -bound2, bound2)
    b2 = jax.random.uniform(k_b2, (CLASSES,), jnp.float32, -bound2, bound2)

    def reference(xr):
        Sr = xr.shape[1]
        if Sr < N_GRAMS:
            pooled = jnp.max(xr, axis=1)             # module fallback: plain max
        else:
            windows = jnp.stack(
                [jnp.mean(xr[:, i:i + N_GRAMS, :], axis=1)
                 for i in range(Sr - N_GRAMS + 1)], axis=1)
            pooled = jnp.max(windows, axis=1)
        h = jnp.maximum(pooled @ w1 + b1, 0.0)
        return jax.nn.sigmoid(h @ w2 + b2)

    # Main test (S >= n_grams): hierarchical n-gram pooling path.
    out = jax.block_until_ready(classifier_forward(x, w1, b1, w2, b2, n_grams=N_GRAMS))
    ref = reference(x)
    assert out.shape == (N, CLASSES)
    err = float(jnp.max(jnp.abs(out - ref)))
    assert err < 1e-2, f"max abs err {err}"

    # Short-sequence fallback (S < n_grams): plain max over the hidden states.
    x_short = jax.random.normal(k_xs, (N, 2, D), dtype=jnp.float32)
    out_s = jax.block_until_ready(
        classifier_forward(x_short, w1, b1, w2, b2, n_grams=N_GRAMS))
    ref_s = reference(x_short)
    assert out_s.shape == (N, CLASSES)
    err_s = float(jnp.max(jnp.abs(out_s - ref_s)))
    assert err_s < 1e-2, f"max abs err (short seq) {err_s}"

    print("KERNEL_OK")
</pallas_src>

<mosaic_0001>
module attributes {stable_mosaic.version = 11 : i64} {
  func.func @classifier_kernel(%arg0: i32, %arg1: i32, %arg2: memref<1x8x768xf32, #tpu.memory_space<vmem>>, %arg3: memref<768x128xbf16, #tpu.memory_space<vmem>>, %arg4: memref<1x128xf32, #tpu.memory_space<vmem>>, %arg5: memref<128x128xbf16, #tpu.memory_space<vmem>>, %arg6: memref<1x128xf32, #tpu.memory_space<vmem>>, %arg7: memref<1x8x128xf32, #tpu.memory_space<vmem>>) attributes {dimension_semantics = [#tpu.dimension_semantics<parallel>, #tpu.dimension_semantics<arbitrary>], iteration_bounds = array<i64: 2, 1>, scalar_prefetch = 0 : i64, scratch_operands = 0 : i64, tpu.core_type = #tpu.core_type<tc>, window_params = [{transform_indices = @transform_0, window_bounds = array<i64: 1, 8, 768>}, {pipeline_mode = #tpu.pipeline_mode<synchronous>, transform_indices = @transform_1, window_bounds = array<i64: 768, 128>}, {pipeline_mode = #tpu.pipeline_mode<synchronous>, transform_indices = @transform_2, window_bounds = array<i64: 1, 128>}, {pipeline_mode = #tpu.pipeline_mode<synchronous>, transform_indices = @transform_3, window_bounds = array<i64: 128, 128>}, {pipeline_mode = #tpu.pipeline_mode<synchronous>, transform_indices = @transform_4, window_bounds = array<i64: 1, 128>}, {transform_indices = @transform_5, window_bounds = array<i64: 1, 8, 128>}]} {
    %c0 = arith.constant 0 : index
    %c0_0 = arith.constant 0 : index
    %c0_1 = arith.constant 0 : index
    %0 = vector.load %arg2[%c0, %c0_0, %c0_1] : memref<1x8x768xf32, #tpu.memory_space<vmem>>, vector<1x1x768xf32>
    %1 = vector.shape_cast %0 : vector<1x1x768xf32> to vector<1x768xf32>
    %c0_2 = arith.constant 0 : index
    %c1 = arith.constant 1 : index
    %c0_3 = arith.constant 0 : index
    %2 = vector.load %arg2[%c0_2, %c1, %c0_3] : memref<1x8x768xf32, #tpu.memory_space<vmem>>, vector<1x1x768xf32>
    %3 = vector.shape_cast %2 : vector<1x1x768xf32> to vector<1x768xf32>
    %4 = arith.addf %1, %3 : vector<1x768xf32>
    %c0_4 = arith.constant 0 : index
    %c2 = arith.constant 2 : index
    %c0_5 = arith.constant 0 : index
    %5 = vector.load %arg2[%c0_4, %c2, %c0_5] : memref<1x8x768xf32, #tpu.memory_space<vmem>>, vector<1x1x768xf32>
    %6 = vector.shape_cast %5 : vector<1x1x768xf32> to vector<1x768xf32>
    %7 = arith.addf %4, %6 : vector<1x768xf32>
    %c0_6 = arith.constant 0 : index
    %c3 = arith.constant 3 : index
    %c0_7 = arith.constant 0 : index
    %8 = vector.load %arg2[%c0_6, %c3, %c0_7] : memref<1x8x768xf32, #tpu.memory_space<vmem>>, vector<1x1x768xf32>
    %9 = vector.shape_cast %8 : vector<1x1x768xf32> to vector<1x768xf32>
    %10 = arith.addf %7, %9 : vector<1x768xf32>
    %11 = arith.subf %10, %1 : vector<1x768xf32>
    %12 = arith.maximumf %7, %11 : vector<1x768xf32>
    %c0_8 = arith.constant 0 : index
    %c4 = arith.constant 4 : index
    %c0_9 = arith.constant 0 : index
    %13 = vector.load %arg2[%c0_8, %c4, %c0_9] : memref<1x8x768xf32, #tpu.memory_space<vmem>>, vector<1x1x768xf32>
    %14 = vector.shape_cast %13 : vector<1x1x768xf32> to vector<1x768xf32>
    %15 = arith.addf %11, %14 : vector<1x768xf32>
    %16 = arith.subf %15, %3 : vector<1x768xf32>
    %17 = arith.maximumf %12, %16 : vector<1x768xf32>
    %c0_10 = arith.constant 0 : index
    %c5 = arith.constant 5 : index
    %c0_11 = arith.constant 0 : index
    %18 = vector.load %arg2[%c0_10, %c5, %c0_11] : memref<1x8x768xf32, #tpu.memory_space<vmem>>, vector<1x1x768xf32>
    %19 = vector.shape_cast %18 : vector<1x1x768xf32> to vector<1x768xf32>
    %20 = arith.addf %16, %19 : vector<1x768xf32>
    %21 = arith.subf %20, %6 : vector<1x768xf32>
    %22 = arith.maximumf %17, %21 : vector<1x768xf32>
    %c0_12 = arith.constant 0 : index
    %c6 = arith.constant 6 : index
    %c0_13 = arith.constant 0 : index
    %23 = vector.load %arg2[%c0_12, %c6, %c0_13] : memref<1x8x768xf32, #tpu.memory_space<vmem>>, vector<1x1x768xf32>
    %24 = vector.shape_cast %23 : vector<1x1x768xf32> to vector<1x768xf32>
    %25 = arith.addf %21, %24 : vector<1x768xf32>
    %26 = arith.subf %25, %9 : vector<1x768xf32>
    %27 = arith.maximumf %22, %26 : vector<1x768xf32>
    %c0_14 = arith.constant 0 : index
    %c7 = arith.constant 7 : index
    %c0_15 = arith.constant 0 : index
    %28 = vector.load %arg2[%c0_14, %c7, %c0_15] : memref<1x8x768xf32, #tpu.memory_space<vmem>>, vector<1x1x768xf32>
    %29 = vector.shape_cast %28 : vector<1x1x768xf32> to vector<1x768xf32>
    %30 = arith.addf %26, %29 : vector<1x768xf32>
    %31 = arith.subf %30, %14 : vector<1x768xf32>
    %32 = arith.maximumf %27, %31 : vector<1x768xf32>
    %cst = arith.constant 0.333333343 : f32
    %33 = vector.broadcast %cst : f32 to vector<1x768xf32>
    %34 = arith.mulf %32, %33 : vector<1x768xf32>
    %35 = arith.truncf %34 : vector<1x768xf32> to vector<1x768xbf16>
    %c0_16 = arith.constant 0 : index
    %c0_17 = arith.constant 0 : index
    %36 = vector.load %arg3[%c0_16, %c0_17] : memref<768x128xbf16, #tpu.memory_space<vmem>>, vector<768x128xbf16>
    %cst_18 = arith.constant dense<0.000000e+00> : vector<1x128xf32>
    %37 = tpu.matmul %35, %36, %cst_18 {dimension_numbers = #tpu.dot_dimension_numbers<[1], [0], [0], [1], [0, 0, 1, 1], [], []>} : vector<1x768xbf16>, vector<768x128xbf16>, vector<1x128xf32> -> vector<1x128xf32>
    %c0_19 = arith.constant 0 : index
    %c0_20 = arith.constant 0 : index
    %38 = vector.load %arg4[%c0_19, %c0_20] : memref<1x128xf32, #tpu.memory_space<vmem>>, vector<1x128xf32>
    %39 = arith.addf %37, %38 : vector<1x128xf32>
    %cst_21 = arith.constant 0.000000e+00 : f32
    %40 = vector.broadcast %cst_21 : f32 to vector<1x128xf32>
    %41 = arith.maximumf %39, %40 : vector<1x128xf32>
    %42 = arith.truncf %41 : vector<1x128xf32> to vector<1x128xbf16>
    %c0_22 = arith.constant 0 : index
    %c0_23 = arith.constant 0 : index
    %43 = vector.load %arg5[%c0_22, %c0_23] : memref<128x128xbf16, #tpu.memory_space<vmem>>, vector<128x128xbf16>
    %cst_24 = arith.constant dense<0.000000e+00> : vector<1x128xf32>
    %44 = tpu.matmul %42, %43, %cst_24 {dimension_numbers = #tpu.dot_dimension_numbers<[1], [0], [0], [1], [0, 0, 1, 1], [], []>} : vector<1x128xbf16>, vector<128x128xbf16>, vector<1x128xf32> -> vector<1x128xf32>
    %c0_25 = arith.constant 0 : index
    %c0_26 = arith.constant 0 : index
    %45 = vector.load %arg6[%c0_25, %c0_26] : memref<1x128xf32, #tpu.memory_space<vmem>>, vector<1x128xf32>
    %46 = arith.addf %44, %45 : vector<1x128xf32>
    %47 = arith.negf %46 : vector<1x128xf32>
    %48 = math.exp %47 : vector<1x128xf32>
    %cst_27 = arith.constant 1.000000e+00 : f32
    %49 = vector.broadcast %cst_27 : f32 to vector<1x128xf32>
    %50 = arith.addf %49, %48 : vector<1x128xf32>
    %51 = arith.divf %49, %50 : vector<1x128xf32>
    %c0_28 = arith.constant 0 : index
    %c0_29 = arith.constant 0 : index
    %c0_30 = arith.constant 0 : index
    %52 = vector.load %arg7[%c0_28, %c0_29, %c0_30] : memref<1x8x128xf32, #tpu.memory_space<vmem>>, vector<1x1x128xf32>
    %53 = vector.shape_cast %52 : vector<1x1x128xf32> to vector<1x128xf32>
    %54 = vector.shape_cast %51 : vector<1x128xf32> to vector<1x1x128xf32>
    tpu.vector_store %arg7[%c0_28, %c0_29, %c0_30], %54 {strides = array<i32>} : memref<1x8x128xf32, #tpu.memory_space<vmem>>, vector<1x1x128xf32>,
    return
  }
  func.func @transform_0(%arg0: i32, %arg1: i32) -> (i32, i32, i32) {
    %c0_i32 = arith.constant 0 : i32
    %c0_i32_0 = arith.constant 0 : i32
    return %arg0, %arg1, %c0_i32 : i32, i32, i32
  }
  func.func @transform_1(%arg0: i32, %arg1: i32) -> (i32, i32) {
    %c0_i32 = arith.constant 0 : i32
    %c0_i32_0 = arith.constant 0 : i32
    %c0_i32_1 = arith.constant 0 : i32
    return %c0_i32, %c0_i32_0 : i32, i32
  }
  func.func @transform_2(%arg0: i32, %arg1: i32) -> (i32, i32) {
    %c0_i32 = arith.constant 0 : i32
    %c0_i32_0 = arith.constant 0 : i32
    %c0_i32_1 = arith.constant 0 : i32
    return %c0_i32, %c0_i32_0 : i32, i32
  }
  func.func @transform_3(%arg0: i32, %arg1: i32) -> (i32, i32) {
    %c0_i32 = arith.constant 0 : i32
    %c0_i32_0 = arith.constant 0 : i32
    %c0_i32_1 = arith.constant 0 : i32
    return %c0_i32, %c0_i32_0 : i32, i32
  }
  func.func @transform_4(%arg0: i32, %arg1: i32) -> (i32, i32) {
    %c0_i32 = arith.constant 0 : i32
    %c0_i32_0 = arith.constant 0 : i32
    %c0_i32_1 = arith.constant 0 : i32
    return %c0_i32, %c0_i32_0 : i32, i32
  }
  func.func @transform_5(%arg0: i32, %arg1: i32) -> (i32, i32, i32) {
    %c0_i32 = arith.constant 0 : i32
    %c0_i32_0 = arith.constant 0 : i32
    %c0_i32_1 = arith.constant 0 : i32
    return %arg0, %c0_i32, %c0_i32_0 : i32, i32, i32
  }
}

</mosaic_0001>

<llo_original>
// kernel: tpu_custom_call.1
$region0: #{tpu_custom_call.1}
  #allocation0 [shape = 'u32[]', space=smem, size = 0x4, offset = 0x4, fixed_abs, tag = 'smem constant byte address 0x4 - core index']
  #allocation1 [shape = 'u32[144,128]{1,0:T(1,128)}', space=vmem, size = 0x12000, scoped, tag = 'internal scratch']
  %s0 = inlined_call_operand.hbm [shape: f32[2,8,768], index: 0, kind: input, shape index: {}]
  %s1 = inlined_call_operand.hbm [shape: bf16[768,128], index: 1, kind: input, shape index: {}]
  %s2 = inlined_call_operand.vmem [shape: f32[1,128], index: 2, kind: input, shape index: {}]
  %s3 = inlined_call_operand.hbm [shape: bf16[128,128], index: 3, kind: input, shape index: {}]
  %s4 = inlined_call_operand.vmem [shape: f32[1,128], index: 4, kind: input, shape index: {}]
  %s5 = inlined_call_operand.hbm [shape: f32[2,8,128], index: 5, kind: output, shape index: {}]
  %s6 = sld [smem:[#allocation0]]
  $region65: #{tpu_custom_call.1} parent=0
    _
  %s8 = ssub.s32 1, %s6
  %s9 = scalar_select 0, %s8, %s6
  $region1: #{tpu_custom_call.1} parent=0
    #allocation2 [shape = 'u8[49152]{0}', space=vmem, size = 0xc000, scoped, tag = 'input window, operand 0']
    #allocation3 [shape = 's32[2]{0}', space=sflag, size = 0x8, scoped, tag = 'scoped memory for tpu_custom_call.1']
    #allocation4 [shape = 's32[2]{0}', space=sflag, size = 0x8, scoped, tag = 'scoped memory for tpu_custom_call.1']
    #allocation5 [shape = 'u8[196608]{0}', space=vmem, size = 0x30000, scoped, tag = 'input window, operand 1, single buffered']
    #allocation6 [shape = 's32[1]{0}', space=sflag, size = 0x4, scoped, tag = 'scoped memory for tpu_custom_call.1']
    #allocation7 [shape = 'u8[32768]{0}', space=vmem, size = 0x8000, scoped, tag = 'input window, operand 3, single buffered']
    #allocation8 [shape = 'u8[8192]{0}', space=vmem, size = 0x2000, scoped, tag = 'output window, operand 0']
    %10 = vsyncpa [#allocation3], 0
    %s11 = scalar_lea.sflag [#allocation3], 1
    %12 = vsyncpa %s11, 0
    %13 = vsyncpa [#allocation6], 0
    %14 = vsyncpa [#allocation4], 0
    %s15 = scalar_lea.sflag [#allocation4], 1
    %16 = vsyncpa %s15, 0
    loop: start=0, step=1, limit=4
    $region2: #{tpu_custom_call.1} parent=1 // loop_pre_header
      _
    $region3: #{tpu_custom_call.1} parent=1 // loop_header
      %s18 = sphi 0, %s22
      %p19 = scmp.ge.s32.totalorder %s18, 4
      %s25 = sphi 0, %s37
      %s26 = sphi 0, %s33
      %s27 = sphi 0, %s25
      %s28 = sphi 0, %s26
      %s29 = sphi 0, %s27
      %s30 = sphi 0, %s28
      %s42 = sphi 0, %s44
      %s45 = sphi 0, %s42
      %s46 = sphi 0, %s45
      %s62 = sphi 0, %s46
      %s66 = sphi 0, %s66
      %s68 = sphi 0, %s66
      %s69 = sphi 0, %s68
      %s83 = sphi 0, %s69
      %s87 = sphi 0, %s87
      %s89 = sphi 0, %s87
      %s90 = sphi 0, %s89
      %s104 = sphi 0, %s90
      %s108 = sphi 0, %s108
      %s110 = sphi 0, %s108
      %s111 = sphi 0, %s110
      %s125 = sphi 0, %s111
      %s129 = sphi 0, %s129
      %s131 = sphi 0, %s129
      %s132 = sphi 0, %s131
      %s146 = sphi 0, %s132
      %s152 = sphi 0, %s154
      %s155 = sphi 0, %s152
      %s156 = sphi 0, %s155
      %s172 = sphi 0, %s156
    $region4: #{tpu_custom_call.1} parent=1 // loop_header_branch
      %21 = sbr.rel (%p19) target = $region8
    $region5: #{tpu_custom_call.1} parent=1 // loop_body
      %s23 = ssub.s32 %s18, 1
      %s24 = ssub.s32 %s18, 2
      %s31 = sadd.s32 1, %s26
      %p32 = scmp.ge.s32.totalorder %s31, 1
      %s33 = scalar_select %p32, 0, %s31
      %s34 = sadd.s32 1, %s25
      %s35 = scalar_select %p32, %s34, %s25
      %p36 = scmp.ge.s32.totalorder %s35, 2
      %s37 = scalar_select %p36, 0, %s35
      %s38 = ssub.s32 %s25, %s37
      %s39 = ssub.s32 %s26, %s33
      %s40 = sor.u32 %s38, %s39
      %p41 = scmp.eq.s32.totalorder %s40, 0
      %s43 = sadd.s32 %s42, 1
      %s44 = scalar_select %p41, %s42, %s43
      %p47 = pneg %p41
      %p48 = scmp.eq.s32.totalorder %s18, 1
      %p49 = por %p47, %p48
      %p50 = scmp.ne.s32.totalorder %s42, %s45
      %p51 = scmp.eq.s32.totalorder %s18, 0
      %p52 = por %p50, %p51
      %p53 = scmp.ne.s32.totalorder %s42, %s45
      %p54 = scmp.eq.s32.totalorder %s23, 1
      %p55 = por %p53, %p54
      %p56 = scmp.ne.s32.totalorder %s45, %s46
      %p57 = scmp.eq.s32.totalorder %s23, 0
      %p58 = por %p56, %p57
      %p59 = scmp.ne.s32.totalorder %s45, %s46
      %p60 = scmp.eq.s32.totalorder %s24, 1
      %p61 = por %p59, %p60
      %p63 = scmp.ne.s32.totalorder %s46, %s62
      %p64 = scmp.eq.s32.totalorder %s24, 0
      %p65 = por %p63, %p64
      %s67 = sadd.s32 %s66, 1
      %p70 = scmp.eq.s32.totalorder %s18, 1
      %p71 = scmp.ne.s32.totalorder %s66, %s68
      %p72 = scmp.eq.s32.totalorder %s18, 0
      %p73 = por %p71, %p72
      %p74 = scmp.ne.s32.totalorder %s66, %s68
      %p75 = scmp.eq.s32.totalorder %s23, 1
      %p76 = por %p74, %p75
      %p77 = scmp.ne.s32.totalorder %s68, %s69
      %p78 = scmp.eq.s32.totalorder %s23, 0
      %p79 = por %p77, %p78
      %p80 = scmp.ne.s32.totalorder %s68, %s69
      %p81 = scmp.eq.s32.totalorder %s24, 1
      %p82 = por %p80, %p81
      %p84 = scmp.ne.s32.totalorder %s69, %s83
      %p85 = scmp.eq.s32.totalorder %s24, 0
      %p86 = por %p84, %p85
      %s88 = sadd.s32 %s87, 1
      %p91 = scmp.eq.s32.totalorder %s18, 1
      %p92 = scmp.ne.s32.totalorder %s87, %s89
      %p93 = scmp.eq.s32.totalorder %s18, 0
      %p94 = por %p92, %p93
      %p95 = scmp.ne.s32.totalorder %s87, %s89
      %p96 = scmp.eq.s32.totalorder %s23, 1
      %p97 = por %p95, %p96
      %p98 = scmp.ne.s32.totalorder %s89, %s90
      %p99 = scmp.eq.s32.totalorder %s23, 0
      %p100 = por %p98, %p99
      %p101 = scmp.ne.s32.totalorder %s89, %s90
      %p102 = scmp.eq.s32.totalorder %s24, 1
      %p103 = por %p101, %p102
      %p105 = scmp.ne.s32.totalorder %s90, %s104
      %p106 = scmp.eq.s32.totalorder %s24, 0
      %p107 = por %p105, %p106
      %s109 = sadd.s32 %s108, 1
      %p112 = scmp.eq.s32.totalorder %s18, 1
      %p113 = scmp.ne.s32.totalorder %s108, %s110
      %p114 = scmp.eq.s32.totalorder %s18, 0
      %p115 = por %p113, %p114
      %p116 = scmp.ne.s32.totalorder %s108, %s110
      %p117 = scmp.eq.s32.totalorder %s23, 1
      %p118 = por %p116, %p117
      %p119 = scmp.ne.s32.totalorder %s110, %s111
      %p120 = scmp.eq.s32.totalorder %s23, 0
      %p121 = por %p119, %p120
      %p122 = scmp.ne.s32.totalorder %s110, %s111
      %p123 = scmp.eq.s32.totalorder %s24, 1
      %p124 = por %p122, %p123
      %p126 = scmp.ne.s32.totalorder %s111, %s125
      %p127 = scmp.eq.s32.totalorder %s24, 0
      %p128 = por %p126, %p127
      %s130 = sadd.s32 %s129, 1
      %p133 = scmp.eq.s32.totalorder %s18, 1
      %p134 = scmp.ne.s32.totalorder %s129, %s131
      %p135 = scmp.eq.s32.totalorder %s18, 0
      %p136 = por %p134, %p135
      %p137 = scmp.ne.s32.totalorder %s129, %s131
      %p138 = scmp.eq.s32.totalorder %s23, 1
      %p139 = por %p137, %p138
      %p140 = scmp.ne.s32.totalorder %s131, %s132
      %p141 = scmp.eq.s32.totalorder %s23, 0
      %p142 = por %p140, %p141
      %p143 = scmp.ne.s32.totalorder %s131, %s132
      %p144 = scmp.eq.s32.totalorder %s24, 1
      %p145 = por %p143, %p144
      %p147 = scmp.ne.s32.totalorder %s132, %s146
      %p148 = scmp.eq.s32.totalorder %s24, 0
      %p149 = por %p147, %p148
      %s150 = ssub.s32 %s25, %s37
      %p151 = scmp.eq.s32.totalorder %s150, 0
      %s153 = sadd.s32 %s152, 1
      %s154 = scalar_select %p151, %s152, %s153
      %p157 = pneg %p151
      %p158 = scmp.eq.s32.totalorder %s18, 1
      %p159 = por %p157, %p158
      %p160 = scmp.ne.s32.totalorder %s152, %s155
      %p161 = scmp.eq.s32.totalorder %s18, 0
      %p162 = por %p160, %p161
      %p163 = scmp.ne.s32.totalorder %s152, %s155
      %p164 = scmp.eq.s32.totalorder %s23, 1
      %p165 = por %p163, %p164
      %p166 = scmp.ne.s32.totalorder %s155, %s156
      %p167 = scmp.eq.s32.totalorder %s23, 0
      %p168 = por %p166, %p167
      %p169 = scmp.ne.s32.totalorder %s155, %s156
      %p170 = scmp.eq.s32.totalorder %s24, 1
      %p171 = por %p169, %p170
      %p173 = scmp.ne.s32.totalorder %s156, %s172
      %p174 = scmp.eq.s32.totalorder %s24, 0
      %p175 = por %p173, %p174
      %p176 = scmp.le.s32.totalorder 1, %s18
      %p177 = scmp.lt.s32.totalorder %s18, 3
      %p178 = pnand %p176, %p177
      %p179 = pneg %p178
      // Predicated region
      $region9: #{tpu_custom_call.1} parent=5 // pred_check
        _
      $region10: #{tpu_custom_call.1} parent=5 // pred_check_branch
        %181 = sbr.rel (%p178) target = $region12
      $region11: #{tpu_custom_call.1} parent=5 // pred_region
        %s182 = ssub.s32 %s18, 1
        // Predicated region
        $region13: #{tpu_custom_call.1} parent=11 // pred_check
          %p183 = pneg %p79
        $region14: #{tpu_custom_call.1} parent=11 // pred_check_branch
          %185 = sbr.rel (%p183) target = $region16
        $region15: #{tpu_custom_call.1} parent=11 // pred_region
          %s187 = ssub.s32 6144, 6144
          %188 = vsyncadd [#allocation6], %s187
          %s189 = sshll.u32 [#allocation5], 4
          %s190 = int_to_ptr.vmem [resolvable:$true] %s189
          %195 = dma.hbm_to_vmem [thread:$0]  %s1, 6144, %s190, [#allocation6], 64, 64, 4
        $region16: #{tpu_custom_call.1} parent=11 // pred_fallthru
          _
        // Predicated region
        $region17: #{tpu_custom_call.1} parent=11 // pred_check
          %p196 = pneg %p100
        $region18: #{tpu_custom_call.1} parent=11 // pred_check_branch
          %198 = sbr.rel (%p196) target = $region20
        $region19: #{tpu_custom_call.1} parent=11 // pred_region
          _
        $region20: #{tpu_custom_call.1} parent=11 // pred_fallthru
          _
        // Predicated region
        $region21: #{tpu_custom_call.1} parent=11 // pred_check
          %p199 = pneg %p121
        $region22: #{tpu_custom_call.1} parent=11 // pred_check_branch
          %201 = sbr.rel (%p199) target = $region24
        $region23: #{tpu_custom_call.1} parent=11 // pred_region
          %s203 = ssub.s32 1024, 1024
          %204 = vsyncadd [#allocation6], %s203
          %s205 = sshll.u32 [#allocation7], 4
          %s206 = int_to_ptr.vmem [resolvable:$true] %s205
          %211 = dma.hbm_to_vmem [thread:$0]  %s3, 1024, %s206, [#allocation6], 64, 64, 4
        $region24: #{tpu_custom_call.1} parent=11 // pred_fallthru
          _
        // Predicated region
        $region25: #{tpu_custom_call.1} parent=11 // pred_check
          %p212 = pneg %p142
        $region26: #{tpu_custom_call.1} parent=11 // pred_check_branch
          %214 = sbr.rel (%p212) target = $region28
        $region27: #{tpu_custom_call.1} parent=11 // pred_region
          _
        $region28: #{tpu_custom_call.1} parent=11 // pred_fallthru
          _
      $region12: #{tpu_custom_call.1} parent=5 // pred_fallthru
        _
      %p215 = scmp.lt.s32.totalorder %s18, 2
      // Predicated region
      $region29: #{tpu_custom_call.1} parent=5 // pred_check
        %p216 = pneg %p215
      $region30: #{tpu_custom_call.1} parent=5 // pred_check_branch
        %218 = sbr.rel (%p216) target = $region32
      $region31: #{tpu_custom_call.1} parent=5 // pred_region
        // Predicated region
        $region33: #{tpu_custom_call.1} parent=31 // pred_check
          %p219 = pneg %p52
        $region34: #{tpu_custom_call.1} parent=31 // pred_check_branch
          %221 = sbr.rel (%p219) target = $region36
        $region35: #{tpu_custom_call.1} parent=31 // pred_region
          %s222 = sand.u32 %s42, 1
          %s223 = scalar_lea.sflag [#allocation3], %s222
          %s224 = sand.u32 %s42, 1
          %s225 = smul.addr %s224, 48
          %s226 = scalar_lea.vmem [#allocation2], %s225
          %s228 = ssub.s32 768, 768
          %229 = vsyncadd %s223, %s228
          %s230 = smul.addr %s26, 6
          %s231 = smul.addr %s25, 6
          %s232 = sadd.s32 %s230, %s231
          %s233 = smul.addr %s232, 128
          %s234 = scalar_lea.hbm %s0, %s233
          %s236 = sshll.u32 %s226, 4
          %s237 = int_to_ptr.vmem [resolvable:$true] %s236
          %239 = dma.hbm_to_vmem [thread:$0]  %s234, 768, %s237, %s223
        $region36: #{tpu_custom_call.1} parent=31 // pred_fallthru
          _
      $region32: #{tpu_custom_call.1} parent=5 // pred_fallthru
        _
      %p240 = scmp.le.s32.totalorder 1, %s18
      %p241 = scmp.lt.s32.totalorder %s18, 3
      %p242 = pnand %p240, %p241
      %p243 = pneg %p242
      // Predicated region
      $region37: #{tpu_custom_call.1} parent=5 // pred_check
        _
      $region38: #{tpu_custom_call.1} parent=5 // pred_check_branch
        %245 = sbr.rel (%p242) target = $region40
      $region39: #{tpu_custom_call.1} parent=5 // pred_region
        %s246 = ssub.s32 %s18, 1
        %s247 = sand.u32 %s45, 1
        %s248 = scalar_lea.sflag [#allocation3], %s247
        %s249 = sand.u32 %s45, 1
        %s250 = smul.addr %s249, 48
        %s251 = scalar_lea.vmem [#allocation2], %s250
        // Predicated region
        $region41: #{tpu_custom_call.1} parent=39 // pred_check
          %p252 = pneg %p58
        $region42: #{tpu_custom_call.1} parent=39 // pred_check_branch
          %254 = sbr.rel (%p252) target = $region44
        $region43: #{tpu_custom_call.1} parent=39 // pred_region
          %255 = dma.done %s248, 768
        $region44: #{tpu_custom_call.1} parent=39 // pred_fallthru
          _
        // Predicated region
        $region45: #{tpu_custom_call.1} parent=39 // pred_check
          %p256 = pneg %p79
        $region46: #{tpu_custom_call.1} parent=39 // pred_check_branch
          %258 = sbr.rel (%p256) target = $region48
        $region47: #{tpu_custom_call.1} parent=39 // pred_region
          %259 = dma.done [#allocation6], 6144
        $region48: #{tpu_custom_call.1} parent=39 // pred_fallthru
          _
        // Predicated region
        $region49: #{tpu_custom_call.1} parent=39 // pred_check
          %p260 = pneg %p121
        $region50: #{tpu_custom_call.1} parent=39 // pred_check_branch
          %262 = sbr.rel (%p260) target = $region52
        $region51: #{tpu_custom_call.1} parent=39 // pred_region
          %263 = dma.done [#allocation6], 1024
        $region52: #{tpu_custom_call.1} parent=39 // pred_fallthru
          _
        %s264 = sand.u32 %s45, 1
        %s265 = scalar_lea.sflag [#allocation3], %s264
        %s266 = sand.u32 %s45, 1
        %s267 = smul.addr %s266, 48
        %s268 = scalar_lea.vmem [#allocation2], %s267
        %p269 = pneg %p58
        %p270 = pneg %p55
        %p271 = pneg %p79
        %p272 = pneg %p76
        %p273 = pneg %p100
        %p274 = pneg %p97
        %p275 = pneg %p121
        %p276 = pneg %p118
        %p277 = pneg %p142
        %p278 = pneg %p139
        %p279 = pneg %p168
        %p280 = pneg %p165
        %s281 = sand.u32 %s155, 1
        %s282 = scalar_lea.sflag [#allocation4], %s281
        %s283 = sand.u32 %s155, 1
        %s284 = smul.addr %s283, 8
        %s285 = scalar_lea.vmem [#allocation8], %s284
        %v287 = vld [vmem:[%s251] ss:$8 sm:$0xf]
        %v288 = vld [vmem:[%s251] ss:$8 sm:$0x30]
        %v289 = vor.u32 %v287, %v288
        %s290 = scalar_lea.vmem %s251, 1 [#allocation2]
        %v291 = vld [vmem:[%s290] ss:$8 sm:$0xf]
        %v292 = vld [vmem:[%s290] ss:$8 sm:$0x30]
        %v293 = vor.u32 %v291, %v292
        %v294 = vadd.f32 %v289, %v293
        %s295 = scalar_lea.vmem %s251, 2 [#allocation2]
        %v296 = vld [vmem:[%s295] ss:$8 sm:$0xf]
        %v297 = vld [vmem:[%s295] ss:$8 sm:$0x30]
        %v298 = vor.u32 %v296, %v297
        %v299 = vadd.f32 %v294, %v298
        %s300 = scalar_lea.vmem %s251, 3 [#allocation2]
        %v301 = vld [vmem:[%s300] ss:$8 sm:$0xf]
        %v302 = vld [vmem:[%s300] ss:$8 sm:$0x30]
        %v303 = vor.u32 %v301, %v302
        %v304 = vadd.f32 %v299, %v303
        %v305 = vsub.f32 %v304, %v289
        %v306 = vmax.f32 %v299, %v305
        %s307 = scalar_lea.vmem %s251, 4 [#allocation2]
        %v308 = vld [vmem:[%s307] ss:$8 sm:$0xf]
        %v309 = vld [vmem:[%s307] ss:$8 sm:$0x30]
        %v310 = vor.u32 %v308, %v309
        %v311 = vadd.f32 %v305, %v310
        %v312 = vsub.f32 %v311, %v293
        %v313 = vmax.f32 %v306, %v312
        %s314 = scalar_lea.vmem %s251, 5 [#allocation2]
        %v315 = vld [vmem:[%s314] ss:$8 sm:$0xf]
        %v316 = vld [vmem:[%s314] ss:$8 sm:$0x30]
        %v317 = vor.u32 %v315, %v316
        %v318 = vadd.f32 %v312, %v317
        %v319 = vsub.f32 %v318, %v298
        %v320 = vmax.f32 %v313, %v319
        %s321 = scalar_lea.vmem %s251, 6 [#allocation2]
        %v322 = vld [vmem:[%s321] ss:$8 sm:$0xf]
        %v323 = vld [vmem:[%s321] ss:$8 sm:$0x30]
        %v324 = vor.u32 %v322, %v323
        %v325 = vadd.f32 %v319, %v324
        %v326 = vsub.f32 %v325, %v303
        %v327 = vmax.f32 %v320, %v326
        %s328 = scalar_lea.vmem %s251, 7 [#allocation2]
        %v329 = vld [vmem:[%s328] ss:$8 sm:$0xf]
        %v330 = vld [vmem:[%s328] ss:$8 sm:$0x30]
        %v331 = vor.u32 %v329, %v330
        %v332 = vadd.f32 %v326, %v331
        %v333 = vsub.f32 %v332, %v310
        %v334 = vmax.f32 %v327, %v333
        %v335 = vmul.f32 %v334, 0.33333334
        %v337 = vlaneseq
        %v338 = vshrl.u32 %v337, 7
        %v339 = vsub.s32 0, %v338
        %v340 = vrot.slane %v335, %v339
        %v341 = vlaneseq
        %v342 = vshrl.u32 %v341, 7
        %v343 = vsub.s32 1, %v342
        %v344 = vrot.slane %v335, %v343
        %v345 = vlaneseq
        %v346 = vshrl.u32 %v345, 7
        %v347 = vsub.s32 2, %v346
        %v348 = vrot.slane %v335, %v347
        %v349 = vlaneseq
        %v350 = vshrl.u32 %v349, 7
        %v351 = vsub.s32 3, %v350
        %v352 = vrot.slane %v335, %v351
        %v353 = vlaneseq
        %v354 = vshrl.u32 %v353, 7
        %v355 = vsub.s32 4, %v354
        %v356 = vrot.slane %v335, %v355
        %v357 = vlaneseq
        %v358 = vshrl.u32 %v357, 7
        %v359 = vsub.s32 5, %v358
        %v360 = vrot.slane %v335, %v359
        %v367 = vpack.c.bf16 %v340, %v340
        %v368 = vpack.c.bf16 %v344, %v344
        %v369 = vpack.c.bf16 %v348, %v348
        %v370 = vpack.c.bf16 %v352, %v352
        %v371 = vpack.c.bf16 %v356, %v356
        %v372 = vpack.c.bf16 %v360, %v360
        %v373 = vld [vmem:[#allocation5] sm:$0xf]
        %v374 = vld [vmem:[#allocation5 + $0x4] sm:$0xf]
        %v375 = vld [vmem:[#allocation5 + $0x8] sm:$0xf]
        %v376 = vld [vmem:[#allocation5 + $0xc] sm:$0xf]
        %v377 = vld [vmem:[#allocation5 + $0x10] sm:$0xf]
        %v378 = vld [vmem:[#allocation5 + $0x14] sm:$0xf]
        %v379 = vld [vmem:[#allocation5 + $0x18] sm:$0xf]
        %v380 = vld [vmem:[#allocation5 + $0x1c] sm:$0xf]
        %v381 = vld [vmem:[#allocation5 + $0x20] sm:$0xf]
        %v382 = vld [vmem:[#allocation5 + $0x24] sm:$0xf]
        %v383 = vld [vmem:[#allocation5 + $0x28] sm:$0xf]
        %v384 = vld [vmem:[#allocation5 + $0x2c] sm:$0xf]
        %v385 = vld [vmem:[#allocation5 + $0x30] sm:$0xf]
        %v386 = vld [vmem:[#allocation5 + $0x34] sm:$0xf]
        %v387 = vld [vmem:[#allocation5 + $0x38] sm:$0xf]
        %v388 = vld [vmem:[#allocation5 + $0x3c] sm:$0xf]
        %v389 = vld [vmem:[#allocation5 + $0x40] sm:$0xf]
        %v390 = vld [vmem:[#allocation5 + $0x44] sm:$0xf]
        %v391 = vld [vmem:[#allocation5 + $0x48] sm:$0xf]
        %v392 = vld [vmem:[#allocation5 + $0x4c] sm:$0xf]
        %v393 = vld [vmem:[#allocation5 + $0x50] sm:$0xf]
        %v394 = vld [vmem:[#allocation5 + $0x54] sm:$0xf]
        %v395 = vld [vmem:[#allocation5 + $0x58] sm:$0xf]
        %v396 = vld [vmem:[#allocation5 + $0x5c] sm:$0xf]
        %v397 = vld [vmem:[#allocation5 + $0x60] sm:$0xf]
        %v398 = vld [vmem:[#allocation5 + $0x64] sm:$0xf]
        %v399 = vld [vmem:[#allocation5 + $0x68] sm:$0xf]
        %v400 = vld [vmem:[#allocation5 + $0x6c] sm:$0xf]
        %v401 = vld [vmem:[#allocation5 + $0x70] sm:$0xf]
        %v402 = vld [vmem:[#allocation5 + $0x74] sm:$0xf]
        %v403 = vld [vmem:[#allocation5 + $0x78] sm:$0xf]
        %v404 = vld [vmem:[#allocation5 + $0x7c] sm:$0xf]
        %v405 = vld [vmem:[#allocation5 + $0x80] sm:$0xf]
        %v406 = vld [vmem:[#allocation5 + $0x84] sm:$0xf]
        %v407 = vld [vmem:[#allocation5 + $0x88] sm:$0xf]
        %v408 = vld [vmem:[#allocation5 + $0x8c] sm:$0xf]
        %v409 = vld [vmem:[#allocation5 + $0x90] sm:$0xf]
        %v410 = vld [vmem:[#allocation5 + $0x94] sm:$0xf]
        %v411 = vld [vmem:[#allocation5 + $0x98] sm:$0xf]
        %v412 = vld [vmem:[#allocation5 + $0x9c] sm:$0xf]
        %v413 = vld [vmem:[#allocation5 + $0xa0] sm:$0xf]
        %v414 = vld [vmem:[#allocation5 + $0xa4] sm:$0xf]
        %v415 = vld [vmem:[#allocation5 + $0xa8] sm:$0xf]
        %v416 = vld [vmem:[#allocation5 + $0xac] sm:$0xf]
        %v417 = vld [vmem:[#allocation5 + $0xb0] sm:$0xf]
        %v418 = vld [vmem:[#allocation5 + $0xb4] sm:$0xf]
        %v419 = vld [vmem:[#allocation5 + $0xb8] sm:$0xf]
        %v420 = vld [vmem:[#allocation5 + $0xbc] sm:$0xf]
        %v421 = vld [vmem:[#allocation5 + $0xc0] sm:$0xf]
        %v422 = vld [vmem:[#allocation5 + $0xc4] sm:$0xf]
        %v423 = vld [vmem:[#allocation5 + $0xc8] sm:$0xf]
        %v424 = vld [vmem:[#allocation5 + $0xcc] sm:$0xf]
        %v425 = vld [vmem:[#allocation5 + $0xd0] sm:$0xf]
        %v426 = vld [vmem:[#allocation5 + $0xd4] sm:$0xf]
        %v427 = vld [vmem:[#allocation5 + $0xd8] sm:$0xf]
        %v428 = vld [vmem:[#allocation5 + $0xdc] sm:$0xf]
        %v429 = vld [vmem:[#allocation5 + $0xe0] sm:$0xf]
        %v430 = vld [vmem:[#allocation5 + $0xe4] sm:$0xf]
        %v431 = vld [vmem:[#allocation5 + $0xe8] sm:$0xf]
        %v432 = vld [vmem:[#allocation5 + $0xec] sm:$0xf]
        %v433 = vld [vmem:[#allocation5 + $0xf0] sm:$0xf]
        %v434 = vld [vmem:[#allocation5 + $0xf4] sm:$0xf]
        %v435 = vld [vmem:[#allocation5 + $0xf8] sm:$0xf]
        %v436 = vld [vmem:[#allocation5 + $0xfc] sm:$0xf]
        %v437 = vld [vmem:[#allocation5 + $0x100] sm:$0xf]
        %v438 = vld [vmem:[#allocation5 + $0x104] sm:$0xf]
        %v439 = vld [vmem:[#allocation5 + $0x108] sm:$0xf]
        %v440 = vld [vmem:[#allocation5 + $0x10c] sm:$0xf]
        %v441 = vld [vmem:[#allocation5 + $0x110] sm:$0xf]
        %v442 = vld [vmem:[#allocation5 + $0x114] sm:$0xf]
        %v443 = vld [vmem:[#allocation5 + $0x118] sm:$0xf]
        %v444 = vld [vmem:[#allocation5 + $0x11c] sm:$0xf]
        %v445 = vld [vmem:[#allocation5 + $0x120] sm:$0xf]
        %v446 = vld [vmem:[#allocation5 + $0x124] sm:$0xf]
        %v447 = vld [vmem:[#allocation5 + $0x128] sm:$0xf]
        %v448 = vld [vmem:[#allocation5 + $0x12c] sm:$0xf]
        %v449 = vld [vmem:[#allocation5 + $0x130] sm:$0xf]
        %v450 = vld [vmem:[#allocation5 + $0x134] sm:$0xf]
        %v451 = vld [vmem:[#allocation5 + $0x138] sm:$0xf]
        %v452 = vld [vmem:[#allocation5 + $0x13c] sm:$0xf]
        %v453 = vld [vmem:[#allocation5 + $0x140] sm:$0xf]
        %v454 = vld [vmem:[#allocation5 + $0x144] sm:$0xf]
        %v455 = vld [vmem:[#allocation5 + $0x148] sm:$0xf]
        %v456 = vld [vmem:[#allocation5 + $0x14c] sm:$0xf]
        %v457 = vld [vmem:[#allocation5 + $0x150] sm:$0xf]
        %v458 = vld [vmem:[#allocation5 + $0x154] sm:$0xf]
        %v459 = vld [vmem:[#allocation5 + $0x158] sm:$0xf]
        %v460 = vld [vmem:[#allocation5 + $0x15c] sm:$0xf]
        %v461 = vld [vmem:[#allocation5 + $0x160] sm:$0xf]
        %v462 = vld [vmem:[#allocation5 + $0x164] sm:$0xf]
        %v463 = vld [vmem:[#allocation5 + $0x168] sm:$0xf]
        %v464 = vld [vmem:[#allocation5 + $0x16c] sm:$0xf]
        %v465 = vld [vmem:[#allocation5 + $0x170] sm:$0xf]
        %v466 = vld [vmem:[#allocation5 + $0x174] sm:$0xf]
        %v467 = vld [vmem:[#allocation5 + $0x178] sm:$0xf]
        %v468 = vld [vmem:[#allocation5 + $0x17c] sm:$0xf]
        %v469 = vld [vmem:[%s2] sm:$0x1]
        %v566 = vunpack.c.l.b16 %v373
        %v567 = vunpack.c.l.b16 %v374
        %v568 = vunpack.c.l.b16 %v375
        %v569 = vunpack.c.l.b16 %v376
        %v570 = vunpack.c.l.b16 %v377
        %v571 = vunpack.c.l.b16 %v378
        %v572 = vunpack.c.l.b16 %v379
        %v573 = vunpack.c.l.b16 %v380
        %v574 = vunpack.c.l.b16 %v381
        %v575 = vunpack.c.l.b16 %v382
        %v576 = vunpack.c.l.b16 %v383
        %v577 = vunpack.c.l.b16 %v384
        %v578 = vunpack.c.l.b16 %v385
        %v579 = vunpack.c.l.b16 %v386
        %v580 = vunpack.c.l.b16 %v387
        %v581 = vunpack.c.l.b16 %v388
        %v582 = vunpack.c.l.b16 %v389
        %v583 = vunpack.c.l.b16 %v390
        %v584 = vunpack.c.l.b16 %v391
        %v585 = vunpack.c.l.b16 %v392
        %v586 = vunpack.c.l.b16 %v393
        %v587 = vunpack.c.l.b16 %v394
        %v588 = vunpack.c.l.b16 %v395
        %v589 = vunpack.c.l.b16 %v396
        %v590 = vunpack.c.l.b16 %v397
        %v591 = vunpack.c.l.b16 %v398
        %v592 = vunpack.c.l.b16 %v399
        %v593 = vunpack.c.l.b16 %v400
        %v594 = vunpack.c.l.b16 %v401
        %v595 = vunpack.c.l.b16 %v402
        %v596 = vunpack.c.l.b16 %v403
        %v597 = vunpack.c.l.b16 %v404
        %v598 = vunpack.c.l.b16 %v405
        %v599 = vunpack.c.l.b16 %v406
        %v600 = vunpack.c.l.b16 %v407
        %v601 = vunpack.c.l.b16 %v408
        %v602 = vunpack.c.l.b16 %v409
        %v603 = vunpack.c.l.b16 %v410
        %v604 = vunpack.c.l.b16 %v411
        %v605 = vunpack.c.l.b16 %v412
        %v606 = vunpack.c.l.b16 %v413
        %v607 = vunpack.c.l.b16 %v414
        %v608 = vunpack.c.l.b16 %v415
        %v609 = vunpack.c.l.b16 %v416
        %v610 = vunpack.c.l.b16 %v417
        %v611 = vunpack.c.l.b16 %v418
        %v612 = vunpack.c.l.b16 %v419
        %v613 = vunpack.c.l.b16 %v420
        %v614 = vunpack.c.l.b16 %v421
        %v615 = vunpack.c.l.b16 %v422
        %v616 = vunpack.c.l.b16 %v423
        %v617 = vunpack.c.l.b16 %v424
        %v618 = vunpack.c.l.b16 %v425
        %v619 = vunpack.c.l.b16 %v426
        %v620 = vunpack.c.l.b16 %v427
        %v621 = vunpack.c.l.b16 %v428
        %v622 = vunpack.c.l.b16 %v429
        %v623 = vunpack.c.l.b16 %v430
        %v624 = vunpack.c.l.b16 %v431
        %v625 = vunpack.c.l.b16 %v432
        %v626 = vunpack.c.l.b16 %v433
        %v627 = vunpack.c.l.b16 %v434
        %v628 = vunpack.c.l.b16 %v435
        %v629 = vunpack.c.l.b16 %v436
        %v630 = vunpack.c.l.b16 %v437
        %v631 = vunpack.c.l.b16 %v438
        %v632 = vunpack.c.l.b16 %v439
        %v633 = vunpack.c.l.b16 %v440
        %v634 = vunpack.c.l.b16 %v441
        %v635 = vunpack.c.l.b16 %v442
        %v636 = vunpack.c.l.b16 %v443
        %v637 = vunpack.c.l.b16 %v444
        %v638 = vunpack.c.l.b16 %v445
        %v639 = vunpack.c.l.b16 %v446
        %v640 = vunpack.c.l.b16 %v447
        %v641 = vunpack.c.l.b16 %v448
        %v642 = vunpack.c.l.b16 %v449
        %v643 = vunpack.c.l.b16 %v450
        %v644 = vunpack.c.l.b16 %v451
        %v645 = vunpack.c.l.b16 %v452
        %v646 = vunpack.c.l.b16 %v453
        %v647 = vunpack.c.l.b16 %v454
        %v648 = vunpack.c.l.b16 %v455
        %v649 = vunpack.c.l.b16 %v456
        %v650 = vunpack.c.l.b16 %v457
        %v651 = vunpack.c.l.b16 %v458
        %v652 = vunpack.c.l.b16 %v459
        %v653 = vunpack.c.l.b16 %v460
        %v654 = vunpack.c.l.b16 %v461
        %v655 = vunpack.c.l.b16 %v462
        %v656 = vunpack.c.l.b16 %v463
        %v657 = vunpack.c.l.b16 %v464
        %v658 = vunpack.c.l.b16 %v465
        %v659 = vunpack.c.l.b16 %v466
        %v660 = vunpack.c.l.b16 %v467
        %v661 = vunpack.c.l.b16 %v468
        %v662 = vpack.c.b16 %v567, %v566
        %v663 = vpack.c.b16 %v569, %v568
        %v664 = vpack.c.b16 %v571, %v570
        %v665 = vpack.c.b16 %v573, %v572
        %v666 = vpack.c.b16 %v575, %v574
        %v667 = vpack.c.b16 %v577, %v576
        %v668 = vpack.c.b16 %v579, %v578
        %v669 = vpack.c.b16 %v581, %v580
        %v670 = vpack.c.b16 %v583, %v582
        %v671 = vpack.c.b16 %v585, %v584
        %v672 = vpack.c.b16 %v587, %v586
        %v673 = vpack.c.b16 %v589, %v588
        %v674 = vpack.c.b16 %v591, %v590
        %v675 = vpack.c.b16 %v593, %v592
        %v676 = vpack.c.b16 %v595, %v594
        %v677 = vpack.c.b16 %v597, %v596
        %v678 = vpack.c.b16 %v599, %v598
        %v679 = vpack.c.b16 %v601, %v600
        %v680 = vpack.c.b16 %v603, %v602
        %v681 = vpack.c.b16 %v605, %v604
        %v682 = vpack.c.b16 %v607, %v606
        %v683 = vpack.c.b16 %v609, %v608
        %v684 = vpack.c.b16 %v611, %v610
        %v685 = vpack.c.b16 %v613, %v612
        %v686 = vpack.c.b16 %v615, %v614
        %v687 = vpack.c.b16 %v617, %v616
        %v688 = vpack.c.b16 %v619, %v618
        %v689 = vpack.c.b16 %v621, %v620
        %v690 = vpack.c.b16 %v623, %v622
        %v691 = vpack.c.b16 %v625, %v624
        %v692 = vpack.c.b16 %v627, %v626
        %v693 = vpack.c.b16 %v629, %v628
        %v694 = vpack.c.b16 %v631, %v630
        %v695 = vpack.c.b16 %v633, %v632
        %v696 = vpack.c.b16 %v635, %v634
        %v697 = vpack.c.b16 %v637, %v636
        %v698 = vpack.c.b16 %v639, %v638
        %v699 = vpack.c.b16 %v641, %v640
        %v700 = vpack.c.b16 %v643, %v642
        %v701 = vpack.c.b16 %v645, %v644
        %v702 = vpack.c.b16 %v647, %v646
        %v703 = vpack.c.b16 %v649, %v648
        %v704 = vpack.c.b16 %v651, %v650
        %v705 = vpack.c.b16 %v653, %v652
        %v706 = vpack.c.b16 %v655, %v654
        %v707 = vpack.c.b16 %v657, %v656
        %v708 = vpack.c.b16 %v659, %v658
        %v709 = vpack.c.b16 %v661, %v660
        %758 = vmatprep.subr.bf16.mxu0 0
        %759 = vmatpush1.bf16.msra.mxu0 %v669
        %760 = vmatprep.subr.bf16.mxu0 0
        %761 = vmatpush1.bf16.msra.mxu0 %v668
        %762 = vmatprep.subr.bf16.mxu0 0
        %763 = vmatpush1.bf16.msra.mxu0 %v667
        %764 = vmatprep.subr.bf16.mxu0 0
        %765 = vmatpush1.bf16.msra.mxu0 %v666
        %766 = vmatprep.subr.bf16.mxu0 0
        %767 = vmatpush1.bf16.msra.mxu0 %v665
        %768 = vmatprep.subr.bf16.mxu0 0
        %769 = vmatpush1.bf16.msra.mxu0 %v664
        %770 = vmatprep.subr.bf16.mxu0 0
        %771 = vmatpush1.bf16.msra.mxu0 %v663
        %772 = vmatprep.subr.bf16.mxu0 0
        %773 = vmatpush1.bf16.msra.mxu0 %v662
        %774 = vmatprep.subr.bf16.mxu0 0
        %775 = vmatpush2.bf16.msra.mxu0 %v677
        %776 = vmatprep.subr.bf16.mxu0 0
        %777 = vmatpush2.bf16.msra.mxu0 %v676
        %778 = vmatprep.subr.bf16.mxu0 0
        %779 = vmatpush2.bf16.msra.mxu0 %v675
        %780 = vmatprep.subr.bf16.mxu0 0
        %781 = vmatpush2.bf16.msra.mxu0 %v674
        %782 = vmatprep.subr.bf16.mxu0 0
        %783 = vmatpush2.bf16.msra.mxu0 %v673
        %784 = vmatprep.subr.bf16.mxu0 0
        %785 = vmatpush2.bf16.msra.mxu0 %v672
        %786 = vmatprep.subr.bf16.mxu0 0
        %787 = vmatpush2.bf16.msra.mxu0 %v671
        %788 = vmatprep.subr.bf16.mxu0 0
        %789 = vmatpush2.bf16.msra.mxu0 %v670
        %790 = vmatprep.mubr.bf16.mxu0 %v368
        %791 = vmatmul.mubr.bf16.gmra.mxu0 %v367
        %v792 = vpop.f32.mrf.mxu0
        %v793 = vadd.f32 %v469, %v792
        %v794 = vpop.f32.mrf.mxu0
        %v795 = vpop.f32.mrf.mxu0
        %v796 = vpop.f32.mrf.mxu0
        %797 = vdwg.mxu0
        %798 = vmatprep.subr.bf16.mxu0 0
        %799 = vmatpush1.bf16.msra.mxu0 %v685
        %800 = vmatprep.subr.bf16.mxu0 0
        %801 = vmatpush1.bf16.msra.mxu0 %v684
        %802 = vmatprep.subr.bf16.mxu0 0
        %803 = vmatpush1.bf16.msra.mxu0 %v683
        %804 = vmatprep.subr.bf16.mxu0 0
        %805 = vmatpush1.bf16.msra.mxu0 %v682
        %806 = vmatprep.subr.bf16.mxu0 0
        %807 = vmatpush1.bf16.msra.mxu0 %v681
        %808 = vmatprep.subr.bf16.mxu0 0
        %809 = vmatpush1.bf16.msra.mxu0 %v680
        %810 = vmatprep.subr.bf16.mxu0 0
        %811 = vmatpush1.bf16.msra.mxu0 %v679
        %812 = vmatprep.subr.bf16.mxu0 0
        %813 = vmatpush1.bf16.msra.mxu0 %v678
        %814 = vmatprep.subr.bf16.mxu0 0
        %815 = vmatpush2.bf16.msra.mxu0 %v693
        %816 = vmatprep.subr.bf16.mxu0 0
        %817 = vmatpush2.bf16.msra.mxu0 %v692
        %818 = vmatprep.subr.bf16.mxu0 0
        %819 = vmatpush2.bf16.msra.mxu0 %v691
        %820 = vmatprep.subr.bf16.mxu0 0
        %821 = vmatpush2.bf16.msra.mxu0 %v690
        %822 = vmatprep.subr.bf16.mxu0 0
        %823 = vmatpush2.bf16.msra.mxu0 %v689
        %824 = vmatprep.subr.bf16.mxu0 0
        %825 = vmatpush2.bf16.msra.mxu0 %v688
        %826 = vmatprep.subr.bf16.mxu0 0
        %827 = vmatpush2.bf16.msra.mxu0 %v687
        %828 = vmatprep.subr.bf16.mxu0 0
        %829 = vmatpush2.bf16.msra.mxu0 %v686
        %830 = vmatprep.mubr.bf16.mxu0 %v370
        %831 = vmatmul.mubr.bf16.gmra.mxu0 %v369
        %v832 = vpop.f32.mrf.mxu0
        %v833 = vadd.f32 %v793, %v832
        %v834 = vpop.f32.mrf.mxu0
        %v835 = vpop.f32.mrf.mxu0
        %v836 = vpop.f32.mrf.mxu0
        %837 = vdwg.mxu0
        %838 = vmatprep.subr.bf16.mxu0 0
        %839 = vmatpush1.bf16.msra.mxu0 %v701
        %840 = vmatprep.subr.bf16.mxu0 0
        %841 = vmatpush1.bf16.msra.mxu0 %v700
        %842 = vmatprep.subr.bf16.mxu0 0
        %843 = vmatpush1.bf16.msra.mxu0 %v699
        %844 = vmatprep.subr.bf16.mxu0 0
        %845 = vmatpush1.bf16.msra.mxu0 %v698
        %846 = vmatprep.subr.bf16.mxu0 0
        %847 = vmatpush1.bf16.msra.mxu0 %v697
        %848 = vmatprep.subr.bf16.mxu0 0
        %849 = vmatpush1.bf16.msra.mxu0 %v696
        %850 = vmatprep.subr.bf16.mxu0 0
        %851 = vmatpush1.bf16.msra.mxu0 %v695
        %852 = vmatprep.subr.bf16.mxu0 0
        %853 = vmatpush1.bf16.msra.mxu0 %v694
        %854 = vmatprep.subr.bf16.mxu0 0
        %855 = vmatpush2.bf16.msra.mxu0 %v709
        %856 = vmatprep.subr.bf16.mxu0 0
        %857 = vmatpush2.bf16.msra.mxu0 %v708
        %858 = vmatprep.subr.bf16.mxu0 0
        %859 = vmatpush2.bf16.msra.mxu0 %v707
        %860 = vmatprep.subr.bf16.mxu0 0
        %861 = vmatpush2.bf16.msra.mxu0 %v706
        %862 = vmatprep.subr.bf16.mxu0 0
        %863 = vmatpush2.bf16.msra.mxu0 %v705
        %864 = vmatprep.subr.bf16.mxu0 0
        %865 = vmatpush2.bf16.msra.mxu0 %v704
        %866 = vmatprep.subr.bf16.mxu0 0
        %867 = vmatpush2.bf16.msra.mxu0 %v703
        %868 = vmatprep.subr.bf16.mxu0 0
        %869 = vmatpush2.bf16.msra.mxu0 %v702
        %870 = vmatprep.mubr.bf16.mxu0 %v372
        %871 = vmatmul.mubr.bf16.gmra.mxu0 %v371
        %v872 = vpop.f32.mrf.mxu0
        %v873 = vadd.f32 %v833, %v872
        %v874 = vpop.f32.mrf.mxu0
        %v875 = vpop.f32.mrf.mxu0
        %v876 = vpop.f32.mrf.mxu0
        %877 = vdwg.mxu0
        %v878 = vmax.f32 %v873, 0.0
        %v879 = vpack.c.bf16 %v878, %v878
        %v880 = vld [vmem:[#allocation7] sm:$0xf]
        %v881 = vld [vmem:[#allocation7 + $0x4] sm:$0xf]
        %v882 = vld [vmem:[#allocation7 + $0x8] sm:$0xf]
        %v883 = vld [vmem:[#allocation7 + $0xc] sm:$0xf]
        %v884 = vld [vmem:[#allocation7 + $0x10] sm:$0xf]
        %v885 = vld [vmem:[#allocation7 + $0x14] sm:$0xf]
        %v886 = vld [vmem:[#allocation7 + $0x18] sm:$0xf]
        %v887 = vld [vmem:[#allocation7 + $0x1c] sm:$0xf]
        %v888 = vld [vmem:[#allocation7 + $0x20] sm:$0xf]
        %v889 = vld [vmem:[#allocation7 + $0x24] sm:$0xf]
        %v890 = vld [vmem:[#allocation7 + $0x28] sm:$0xf]
        %v891 = vld [vmem:[#allocation7 + $0x2c] sm:$0xf]
        %v892 = vld [vmem:[#allocation7 + $0x30] sm:$0xf]
        %v893 = vld [vmem:[#allocation7 + $0x34] sm:$0xf]
        %v894 = vld [vmem:[#allocation7 + $0x38] sm:$0xf]
        %v895 = vld [vmem:[#allocation7 + $0x3c] sm:$0xf]
        %v896 = vld [vmem:[%s4] sm:$0x1]
        %v913 = vunpack.c.l.b16 %v880
        %v914 = vunpack.c.l.b16 %v881
        %v915 = vunpack.c.l.b16 %v882
        %v916 = vunpack.c.l.b16 %v883
        %v917 = vunpack.c.l.b16 %v884
        %v918 = vunpack.c.l.b16 %v885
        %v919 = vunpack.c.l.b16 %v886
        %v920 = vunpack.c.l.b16 %v887
        %v921 = vunpack.c.l.b16 %v888
        %v922 = vunpack.c.l.b16 %v889
        %v923 = vunpack.c.l.b16 %v890
        %v924 = vunpack.c.l.b16 %v891
        %v925 = vunpack.c.l.b16 %v892
        %v926 = vunpack.c.l.b16 %v893
        %v927 = vunpack.c.l.b16 %v894
        %v928 = vunpack.c.l.b16 %v895
        %v929 = vpack.c.b16 %v914, %v913
        %v930 = vpack.c.b16 %v916, %v915
        %v931 = vpack.c.b16 %v918, %v917
        %v932 = vpack.c.b16 %v920, %v919
        %v933 = vpack.c.b16 %v922, %v921
        %v934 = vpack.c.b16 %v924, %v923
        %v935 = vpack.c.b16 %v926, %v925
        %v936 = vpack.c.b16 %v928, %v927
        %945 = vmatprep.subr.bf16.mxu0 0
        %946 = vmatpush1.bf16.msra.mxu0 %v936
        %947 = vmatprep.subr.bf16.mxu0 0
        %948 = vmatpush1.bf16.msra.mxu0 %v935
        %949 = vmatprep.subr.bf16.mxu0 0
        %950 = vmatpush1.bf16.msra.mxu0 %v934
        %951 = vmatprep.subr.bf16.mxu0 0
        %952 = vmatpush1.bf16.msra.mxu0 %v933
        %953 = vmatprep.subr.bf16.mxu0 0
        %954 = vmatpush1.bf16.msra.mxu0 %v932
        %955 = vmatprep.subr.bf16.mxu0 0
        %956 = vmatpush1.bf16.msra.mxu0 %v931
        %957 = vmatprep.subr.bf16.mxu0 0
        %958 = vmatpush1.bf16.msra.mxu0 %v930
        %959 = vmatprep.subr.bf16.mxu0 0
        %960 = vmatpush1.bf16.msra.mxu0 %v929
        %961 = vmatprep.subr.bf16.mxu0 0
        %962 = vmatpush2.bf16.msra.mxu0 0
        %963 = vmatprep.subr.bf16.mxu0 0
        %964 = vmatpush2.bf16.msra.mxu0 0
        %965 = vmatprep.subr.bf16.mxu0 0
        %966 = vmatpush2.bf16.msra.mxu0 0
        %967 = vmatprep.subr.bf16.mxu0 0
        %968 = vmatpush2.bf16.msra.mxu0 0
        %969 = vmatprep.subr.bf16.mxu0 0
        %970 = vmatpush2.bf16.msra.mxu0 0
        %971 = vmatprep.subr.bf16.mxu0 0
        %972 = vmatpush2.bf16.msra.mxu0 0
        %973 = vmatprep.subr.bf16.mxu0 0
        %974 = vmatpush2.bf16.msra.mxu0 0
        %975 = vmatprep.subr.bf16.mxu0 0
        %976 = vmatpush2.bf16.msra.mxu0 0
        %977 = vmatprep.mubr.bf16.mxu0 0
        %978 = vmatmul.mubr.bf16.gmra.mxu0 %v879
        %v979 = vpop.f32.mrf.mxu0
        %v980 = vadd.f32 %v896, %v979
        %v981 = vpop.f32.mrf.mxu0
        %v982 = vpop.f32.mrf.mxu0
        %v983 = vpop.f32.mrf.mxu0
        %984 = vdwg.mxu0
        %v985 = vxor.u32 %v980, 2147483648
        %v986 = vmul.f32 %v985, 1.442695
        %v987 = vpow.pop %v986
        %v988 = vadd.f32 %v987, 1.0
        %v989 = vrcp.pop %v988
        %v990 = vmul.f32 1.0, %v989
        %991 = vst [vmem:[%s285] sm:$0x1] %v990
        %s992 = sand.u32 %s155, 1
        %s993 = scalar_lea.sflag [#allocation4], %s992
        %s994 = sand.u32 %s155, 1
        %s995 = smul.addr %s994, 8
        %s996 = scalar_lea.vmem [#allocation8], %s995
        // Predicated region
        $region53: #{tpu_custom_call.1} parent=39 // pred_check
          %p997 = pneg %p165
        $region54: #{tpu_custom_call.1} parent=39 // pred_check_branch
          %999 = sbr.rel (%p997) target = $region56
        $region55: #{tpu_custom_call.1} parent=39 // pred_region
          %s1001 = ssub.s32 128, 128
          %1002 = vsyncadd %s993, %s1001
          %s1003 = smul.addr %s27, 128
          %s1004 = scalar_lea.hbm %s5, %s1003
          %s1006 = sshll.u32 %s996, 4
          %s1007 = int_to_ptr.vmem [resolvable:$true] %s1006
          %1009 = dma.vmem_to_hbm [thread:$0]  %s1007, 128, %s1004, %s993
        $region56: #{tpu_custom_call.1} parent=39 // pred_fallthru
          _
      $region40: #{tpu_custom_call.1} parent=5 // pred_fallthru
        _
      %p1010 = scmp.le.s32.totalorder 2, %s18
      // Predicated region
      $region57: #{tpu_custom_call.1} parent=5 // pred_check
        %p1011 = pneg %p1010
      $region58: #{tpu_custom_call.1} parent=5 // pred_check_branch
        %1013 = sbr.rel (%p1011) target = $region60
      $region59: #{tpu_custom_call.1} parent=5 // pred_region
        %s1014 = ssub.s32 %s18, 2
        // Predicated region
        $region61: #{tpu_custom_call.1} parent=59 // pred_check
          %p1015 = pneg %p171
        $region62: #{tpu_custom_call.1} parent=59 // pred_check_branch
          %1017 = sbr.rel (%p1015) target = $region64
        $region63: #{tpu_custom_call.1} parent=59 // pred_region
          %s1018 = sand.u32 %s156, 1
          %s1019 = scalar_lea.sflag [#allocation4], %s1018
          %s1020 = sand.u32 %s156, 1
          %s1021 = smul.addr %s1020, 8
          %s1022 = scalar_lea.vmem [#allocation8], %s1021
          %1023 = dma.done %s1019, 128
        $region64: #{tpu_custom_call.1} parent=59 // pred_fallthru
          _
      $region60: #{tpu_custom_call.1} parent=5 // pred_fallthru
        _
    $region6: #{tpu_custom_call.1} parent=1 // loop_footer
      %s22 = sadd.s32 1, %s18
    $region7: #{tpu_custom_call.1} parent=1 // loop_footer_branch
      %17 = sbr.rel target = $region3
    $region8: #{tpu_custom_call.1} parent=1 // loop_exit
      _
    %1024 = vsyncpa [#allocation3], 1
    %s1025 = scalar_lea.sflag [#allocation3], 1
    %1026 = vsyncpa %s1025, 1
    %1027 = vsyncpa [#allocation6], 1
    %1028 = vsyncpa [#allocation4], 1
    %s1029 = scalar_lea.sflag [#allocation4], 1
    %1030 = vsyncpa %s1029, 1

</llo_original>
